<compile_context>
chip_gen: v7x
topology: tpu7x:2x2x1
jax: 0.10.0
libtpu: 0.0.40
codegen_flags: <defaults>
</compile_context>

<pallas_src>
import functools
import math

import jax
import jax.numpy as jnp
from jax.experimental import pallas as pl
from jax.experimental.pallas import tpu as pltpu


def _round_up(n: int, m: int) -> int:
    return ((n + m - 1) // m) * m


def make_sinusoidal_pe(max_len: int, d_model: int) -> jnp.ndarray:
    """Standard sinusoidal positional-encoding table (max_len, d_model)."""
    position = jnp.arange(max_len, dtype=jnp.float32)[:, None]
    div_term = jnp.exp(
        jnp.arange(0, d_model, 2, dtype=jnp.float32)
        * (-math.log(10000.0) / d_model)
    )
    pe = jnp.zeros((max_len, d_model), dtype=jnp.float32)
    pe = pe.at[:, 0::2].set(jnp.sin(position * div_term))
    pe = pe.at[:, 1::2].set(jnp.cos(position * div_term))
    return pe


def _fused_kernel(x_ref, w_ref, params_ref, pe_ref, o_ref, *, eps, inv_odim, tm):
    """One (tm, idim) row tile: Linear -> LayerNorm -> ReLU -> *sqrt(d) + PE.

    Padded output lanes [odim, odim_p) carry exactly zero through the whole
    pipeline (zero W columns, zero bias/gamma/beta/pe), so LN statistics are
    computed as full-lane sums divided by the true odim.
    """
    t = pl.program_id(1)                                      # time-tile index

    x = x_ref[...]                                            # (tm, idim) stream dtype
    h = jnp.dot(x, w_ref[...],
                preferred_element_type=jnp.float32)           # MXU, f32 accumulate

    params = params_ref[...]                                  # (8, odim_p) f32 resident
    bias = params[0:1, :]
    gamma_s = params[1:2, :]                                  # gamma * sqrt(odim)
    beta_s = params[2:3, :]                                   # beta  * sqrt(odim)

    h = h + bias

    # LayerNorm over the true odim lanes, single-pass variance (one XLU pass).
    mean = jnp.sum(h, axis=-1, keepdims=True) * inv_odim
    ex2 = jnp.sum(h * h, axis=-1, keepdims=True) * inv_odim
    var = ex2 - mean * mean
    hn = (h - mean) * jax.lax.rsqrt(var + eps)

    # Dropout = identity (eval); ReLU with xscale folded into the affine.
    y = jnp.maximum(hn * gamma_s + beta_s, 0.0)

    # Positional encoding: resident table, slice this tile's rows in VMEM.
    start = pl.multiple_of(t * tm, tm)
    pe = pe_ref[pl.ds(start, tm), :].astype(jnp.float32)

    o_ref[...] = (y + pe).astype(o_ref.dtype)


def legacy_linear_no_subsampling(x, x_mask, w, b, gamma, beta, pe_table,
                                 offset: int = 0, eps: float = 1e-5,
                                 row_tile_cap: int = 512,
                                 stream_dtype=jnp.bfloat16):
    """Forward pass of LegacyLinearNoSubsampling.

    Args:
      x:        (B, T, idim) float32 input.
      x_mask:   (B, 1, T) bool mask (returned unchanged).
      w:        (idim, odim) float32 Linear weight (transposed vs torch layout).
      b, gamma, beta: (odim,) float32 Linear bias / LayerNorm weight / bias.
      pe_table: (max_len, odim) float32 positional-encoding buffer.
      offset:   offset into the positional-encoding table.
      row_tile_cap: cap on the (B*T-independent) time row tile.
      stream_dtype: dtype for the HBM<->VMEM x / W / PE streams (bf16 halves
        the bytes moved for this memory-bound kernel; math stays f32).

    Returns:
      x_out (B, T, odim) f32, pos_emb (1, T, odim) f32, x_mask passthrough.
    """
    B, T, idim = x.shape
    odim = w.shape[1]
    xscale = float(math.sqrt(odim))

    # --- tile / padding geometry -------------------------------------------
    tm = min(_round_up(T, 8), _round_up(row_tile_cap, 8))   # row tile, multiple of 8
    Tp = _round_up(T, tm)                                    # padded time
    nt = Tp // tm
    odim_p = _round_up(odim, 128)                            # lane-dense output

    # --- operand prep (pad + stream-dtype casts) ----------------------------
    # PE rows [offset, offset+T); the f32 slice is also returned as pos_emb.
    pe_slice = jax.lax.dynamic_slice(pe_table, (offset, 0), (T, odim))   # (T, odim)

    xs = x.astype(stream_dtype)
    if Tp != T:
        xs = jnp.pad(xs, ((0, 0), (0, Tp - T), (0, 0)))
    w_p = jnp.pad(w, ((0, 0), (0, odim_p - odim))).astype(stream_dtype)
    pe_p = jnp.pad(pe_slice, ((0, Tp - T), (0, odim_p - odim))).astype(stream_dtype)

    # Merge bias / gamma*xscale / beta*xscale into one (8, odim_p) resident block.
    params = jnp.zeros((8, odim_p), jnp.float32)
    params = params.at[0, :odim].set(b.astype(jnp.float32))
    params = params.at[1, :odim].set(gamma.astype(jnp.float32) * xscale)
    params = params.at[2, :odim].set(beta.astype(jnp.float32) * xscale)

    out_p = pl.pallas_call(
        functools.partial(_fused_kernel, eps=eps, inv_odim=1.0 / odim, tm=tm),
        out_shape=jax.ShapeDtypeStruct((B, Tp, odim_p), jnp.float32),
        grid_spec=pltpu.PrefetchScalarGridSpec(
            num_scalar_prefetch=0,
            grid=(B, nt),
            in_specs=[
                pl.BlockSpec((None, tm, idim), lambda bi, ti: (bi, ti, 0)),  # x tiles (pipelined)
                pl.BlockSpec((idim, odim_p), lambda bi, ti: (0, 0)),         # W (resident)
                pl.BlockSpec((8, odim_p), lambda bi, ti: (0, 0)),            # bias/LN params (resident)
                pl.BlockSpec((Tp, odim_p), lambda bi, ti: (0, 0)),           # PE table (resident)
            ],
            out_specs=pl.BlockSpec((None, tm, odim_p), lambda bi, ti: (bi, ti, 0)),
        ),
        compiler_params=pltpu.CompilerParams(
            # Independent row tiles: both axes parallel (megacore / v7x 2-TC).
            dimension_semantics=("parallel", "parallel"),
            vmem_limit_bytes=32 * 1024 * 1024,
        ),
    )(xs, w_p, params, pe_p)

    x_out = out_p[:, :T, :odim]
    pos_emb = pe_slice[None, :, :]      # dropout = identity in eval
    return x_out, pos_emb, x_mask


if __name__ == "__main__":
    # Small shapes consistent with the module: batch=2, time=12, idim=16, odim=32.
    B, T, IDIM, ODIM = 2, 12, 16, 32
    MAX_LEN = 64

    key = jax.random.PRNGKey(0)
    kx, kw, kb, kg, kbeta = jax.random.split(key, 5)

    x = jax.random.normal(kx, (B, T, IDIM), dtype=jnp.float32)
    x_mask = jnp.ones((B, 1, T), dtype=jnp.bool_)

    w = jax.random.normal(kw, (IDIM, ODIM), dtype=jnp.float32) / math.sqrt(IDIM)
    b = 0.1 * jax.random.normal(kb, (ODIM,), dtype=jnp.float32)
    gamma = 1.0 + 0.1 * jax.random.normal(kg, (ODIM,), dtype=jnp.float32)
    beta = 0.1 * jax.random.normal(kbeta, (ODIM,), dtype=jnp.float32)

    pe_table = make_sinusoidal_pe(MAX_LEN, ODIM)

    # Small row_tile_cap so the test exercises time padding (T=12 -> Tp=16),
    # the multi-tile resident-PE slicing path (nt=2), and odim lane padding (32->128).
    x_out, pos_emb, mask_out = legacy_linear_no_subsampling(
        x, x_mask, w, b, gamma, beta, pe_table, offset=0, row_tile_cap=8
    )
    jax.block_until_ready(x_out)
    jax.block_until_ready(pos_emb)

    # Pure-JAX reference with the same bf16 stream casts (matmul / LN / add in f32).
    xb = x.astype(jnp.bfloat16).astype(jnp.float32)
    wb = w.astype(jnp.bfloat16).astype(jnp.float32)
    peb = pe_table[:T].astype(jnp.bfloat16).astype(jnp.float32)
    h = jnp.einsum("bti,io->bto", xb, wb) + b
    mean = jnp.mean(h, axis=-1, keepdims=True)
    var = jnp.mean((h - mean) ** 2, axis=-1, keepdims=True)
    h = (h - mean) / jnp.sqrt(var + 1e-5) * gamma + beta
    h = jnp.maximum(h, 0.0)
    ref = h * math.sqrt(ODIM) + peb[None]

    assert x_out.shape == (B, T, ODIM)
    assert pos_emb.shape == (1, T, ODIM)
    assert mask_out.shape == (B, 1, T)
    assert jnp.allclose(x_out, ref, atol=2e-3, rtol=2e-3), "mismatch vs reference"
    assert jnp.allclose(pos_emb[0], pe_table[:T], atol=1e-6), "pos_emb mismatch"

    print("KERNEL_OK")
</pallas_src>

<mosaic_0001>
module attributes {stable_mosaic.version = 11 : i64} {
  func.func @_fused_kernel(%arg0: i32, %arg1: i32, %arg2: memref<1x8x16xbf16, #tpu.memory_space<vmem>>, %arg3: memref<16x128xbf16, #tpu.memory_space<vmem>>, %arg4: memref<8x128xf32, #tpu.memory_space<vmem>>, %arg5: memref<16x128xbf16, #tpu.memory_space<vmem>>, %arg6: memref<1x8x128xf32, #tpu.memory_space<vmem>>) attributes {dimension_semantics = [#tpu.dimension_semantics<parallel>, #tpu.dimension_semantics<parallel>], iteration_bounds = array<i64: 2, 2>, scalar_prefetch = 0 : i64, scratch_operands = 0 : i64, tpu.core_type = #tpu.core_type<tc>, window_params = [{transform_indices = @transform_0, window_bounds = array<i64: 1, 8, 16>}, {pipeline_mode = #tpu.pipeline_mode<synchronous>, transform_indices = @transform_1, window_bounds = array<i64: 16, 128>}, {pipeline_mode = #tpu.pipeline_mode<synchronous>, transform_indices = @transform_2, window_bounds = array<i64: 8, 128>}, {pipeline_mode = #tpu.pipeline_mode<synchronous>, transform_indices = @transform_3, window_bounds = array<i64: 16, 128>}, {transform_indices = @transform_4, window_bounds = array<i64: 1, 8, 128>}]} {
    %c0 = arith.constant 0 : index
    %c0_0 = arith.constant 0 : index
    %c0_1 = arith.constant 0 : index
    %0 = vector.load %arg2[%c0, %c0_0, %c0_1] : memref<1x8x16xbf16, #tpu.memory_space<vmem>>, vector<1x8x16xbf16>
    %1 = vector.shape_cast %0 : vector<1x8x16xbf16> to vector<8x16xbf16>
    %c0_2 = arith.constant 0 : index
    %c0_3 = arith.constant 0 : index
    %2 = vector.load %arg3[%c0_2, %c0_3] : memref<16x128xbf16, #tpu.memory_space<vmem>>, vector<16x128xbf16>
    %cst = arith.constant dense<0.000000e+00> : vector<8x128xf32>
    %3 = tpu.matmul %1, %2, %cst {dimension_numbers = #tpu.dot_dimension_numbers<[1], [0], [0], [1], [0, 0, 1, 1], [], []>} : vector<8x16xbf16>, vector<16x128xbf16>, vector<8x128xf32> -> vector<8x128xf32>
    %c0_4 = arith.constant 0 : index
    %c0_5 = arith.constant 0 : index
    %4 = vector.load %arg4[%c0_4, %c0_5] : memref<8x128xf32, #tpu.memory_space<vmem>>, vector<8x128xf32>
    %5 = vector.extract_strided_slice %4 {offsets = [0, 0], sizes = [1, 128], strides = [1, 1]} : vector<8x128xf32> to vector<1x128xf32>
    %6 = vector.extract_strided_slice %4 {offsets = [1, 0], sizes = [1, 128], strides = [1, 1]} : vector<8x128xf32> to vector<1x128xf32>
    %7 = vector.extract_strided_slice %4 {offsets = [2, 0], sizes = [1, 128], strides = [1, 1]} : vector<8x128xf32> to vector<1x128xf32>
    %8 = vector.broadcast %5 : vector<1x128xf32> to vector<8x128xf32>
    %9 = arith.addf %3, %8 : vector<8x128xf32>
    %cst_6 = arith.constant dense<0.000000e+00> : vector<8xf32>
    %10 = vector.multi_reduction <add>, %9, %cst_6 [1] : vector<8x128xf32> to vector<8xf32>
    %11 = vector.shape_cast %10 : vector<8xf32> to vector<8x1xf32>
    %cst_7 = arith.constant 3.125000e-02 : f32
    %12 = vector.broadcast %cst_7 : f32 to vector<8x1xf32>
    %13 = arith.mulf %11, %12 : vector<8x1xf32>
    %14 = arith.mulf %9, %9 : vector<8x128xf32>
    %cst_8 = arith.constant dense<0.000000e+00> : vector<8xf32>
    %15 = vector.multi_reduction <add>, %14, %cst_8 [1] : vector<8x128xf32> to vector<8xf32>
    %16 = vector.shape_cast %15 : vector<8xf32> to vector<8x1xf32>
    %cst_9 = arith.constant 3.125000e-02 : f32
    %17 = vector.broadcast %cst_9 : f32 to vector<8x1xf32>
    %18 = arith.mulf %16, %17 : vector<8x1xf32>
    %19 = arith.mulf %13, %13 : vector<8x1xf32>
    %20 = arith.subf %18, %19 : vector<8x1xf32>
    %21 = vector.broadcast %13 : vector<8x1xf32> to vector<8x128xf32>
    %22 = arith.subf %9, %21 : vector<8x128xf32>
    %cst_10 = arith.constant 9.99999974E-6 : f32
    %23 = vector.broadcast %cst_10 : f32 to vector<8x1xf32>
    %24 = arith.addf %20, %23 : vector<8x1xf32>
    %25 = math.rsqrt %24 : vector<8x1xf32>
    %26 = vector.broadcast %25 : vector<8x1xf32> to vector<8x128xf32>
    %27 = arith.mulf %22, %26 : vector<8x128xf32>
    %28 = vector.broadcast %6 : vector<1x128xf32> to vector<8x128xf32>
    %29 = arith.mulf %27, %28 : vector<8x128xf32>
    %30 = vector.broadcast %7 : vector<1x128xf32> to vector<8x128xf32>
    %31 = arith.addf %29, %30 : vector<8x128xf32>
    %cst_11 = arith.constant 0.000000e+00 : f32
    %32 = vector.broadcast %cst_11 : f32 to vector<8x128xf32>
    %33 = arith.maximumf %31, %32 : vector<8x128xf32>
    %c8_i32 = arith.constant 8 : i32
    %34 = arith.muli %arg1, %c8_i32 : i32
    %35 = tpu.assume_multiple %34, 8 : i32
    %36 = arith.index_cast %35 : i32 to index
    %c0_12 = arith.constant 0 : index
    %37 = vector.load %arg5[%36, %c0_12] : memref<16x128xbf16, #tpu.memory_space<vmem>>, vector<8x128xbf16>
    %38 = arith.extf %37 : vector<8x128xbf16> to vector<8x128xf32>
    %39 = arith.addf %33, %38 : vector<8x128xf32>
    %c0_13 = arith.constant 0 : index
    %c0_14 = arith.constant 0 : index
    %c0_15 = arith.constant 0 : index
    %40 = vector.load %arg6[%c0_13, %c0_14, %c0_15] : memref<1x8x128xf32, #tpu.memory_space<vmem>>, vector<1x8x128xf32>
    %41 = vector.shape_cast %40 : vector<1x8x128xf32> to vector<8x128xf32>
    %42 = vector.shape_cast %39 : vector<8x128xf32> to vector<1x8x128xf32>
    tpu.vector_store %arg6[%c0_13, %c0_14, %c0_15], %42 {strides = array<i32>} : memref<1x8x128xf32, #tpu.memory_space<vmem>>, vector<1x8x128xf32>,
    return
  }
  func.func @transform_0(%arg0: i32, %arg1: i32) -> (i32, i32, i32) {
    %c0_i32 = arith.constant 0 : i32
    %c0_i32_0 = arith.constant 0 : i32
    return %arg0, %arg1, %c0_i32 : i32, i32, i32
  }
  func.func @transform_1(%arg0: i32, %arg1: i32) -> (i32, i32) {
    %c0_i32 = arith.constant 0 : i32
    %c0_i32_0 = arith.constant 0 : i32
    %c0_i32_1 = arith.constant 0 : i32
    return %c0_i32, %c0_i32_0 : i32, i32
  }
  func.func @transform_2(%arg0: i32, %arg1: i32) -> (i32, i32) {
    %c0_i32 = arith.constant 0 : i32
    %c0_i32_0 = arith.constant 0 : i32
    %c0_i32_1 = arith.constant 0 : i32
    return %c0_i32, %c0_i32_0 : i32, i32
  }
  func.func @transform_3(%arg0: i32, %arg1: i32) -> (i32, i32) {
    %c0_i32 = arith.constant 0 : i32
    %c0_i32_0 = arith.constant 0 : i32
    %c0_i32_1 = arith.constant 0 : i32
    return %c0_i32, %c0_i32_0 : i32, i32
  }
  func.func @transform_4(%arg0: i32, %arg1: i32) -> (i32, i32, i32) {
    %c0_i32 = arith.constant 0 : i32
    %c0_i32_0 = arith.constant 0 : i32
    return %arg0, %arg1, %c0_i32 : i32, i32, i32
  }
}

</mosaic_0001>

<llo_original>
// kernel: tpu_custom_call.1
$region0: #{tpu_custom_call.1}
  #allocation0 [shape = 'u32[]', space=smem, size = 0x4, offset = 0x4, fixed_abs, tag = 'smem constant byte address 0x4 - core index']
  #allocation1 [shape = 'u32[144,128]{1,0:T(1,128)}', space=vmem, size = 0x12000, scoped, tag = 'internal scratch']
  %s0 = inlined_call_operand.hbm [shape: bf16[2,16,16], index: 0, kind: input, shape index: {}]
  %s1 = inlined_call_operand.hbm [shape: bf16[16,128], index: 1, kind: input, shape index: {}]
  %s2 = inlined_call_operand.hbm [shape: f32[8,128], index: 2, kind: input, shape index: {}]
  %s3 = inlined_call_operand.vmem [shape: bf16[16,128], index: 3, kind: input, shape index: {}]
  %s4 = inlined_call_operand.hbm [shape: f32[2,16,128], index: 4, kind: output, shape index: {}]
  %s5 = sld [smem:[#allocation0]]
  $region61: #{tpu_custom_call.1} parent=0
    _
  %s7 = ssub.s32 1, %s5
  %s8 = scalar_select 0, %s7, %s5
  $region1: #{tpu_custom_call.1} parent=0
    #allocation2 [shape = 'u8[4096]{0}', space=vmem, size = 0x1000, scoped, tag = 'input window, operand 0']
    #allocation3 [shape = 's32[2]{0}', space=sflag, size = 0x8, scoped, tag = 'scoped memory for tpu_custom_call.1']
    #allocation4 [shape = 's32[2]{0}', space=sflag, size = 0x8, scoped, tag = 'scoped memory for tpu_custom_call.1']
    #allocation5 [shape = 'u8[4096]{0}', space=vmem, size = 0x1000, scoped, tag = 'input window, operand 1, single buffered']
    #allocation6 [shape = 's32[1]{0}', space=sflag, size = 0x4, scoped, tag = 'scoped memory for tpu_custom_call.1']
    #allocation7 [shape = 'u8[4096]{0}', space=vmem, size = 0x1000, scoped, tag = 'input window, operand 2, single buffered']
    #allocation8 [shape = 'u8[8192]{0}', space=vmem, size = 0x2000, scoped, tag = 'output window, operand 0']
    %9 = vsyncpa [#allocation3], 0
    %s10 = scalar_lea.sflag [#allocation3], 1
    %11 = vsyncpa %s10, 0
    %12 = vsyncpa [#allocation6], 0
    %13 = vsyncpa [#allocation4], 0
    %s14 = scalar_lea.sflag [#allocation4], 1
    %15 = vsyncpa %s14, 0
    loop: start=0, step=1, limit=6
    $region2: #{tpu_custom_call.1} parent=1 // loop_pre_header
      _
    $region3: #{tpu_custom_call.1} parent=1 // loop_header
      %s17 = sphi 0, %s21
      %p18 = scmp.ge.s32.totalorder %s17, 6
      %s24 = sphi 0, %s36
      %s25 = sphi 0, %s32
      %s26 = sphi 0, %s24
      %s27 = sphi 0, %s25
      %s28 = sphi 0, %s26
      %s29 = sphi 0, %s27
      %s41 = sphi 0, %s43
      %s44 = sphi 0, %s41
      %s45 = sphi 0, %s44
      %s61 = sphi 0, %s45
      %s65 = sphi 0, %s65
      %s67 = sphi 0, %s65
      %s68 = sphi 0, %s67
      %s82 = sphi 0, %s68
      %s86 = sphi 0, %s86
      %s88 = sphi 0, %s86
      %s89 = sphi 0, %s88
      %s103 = sphi 0, %s89
      %s107 = sphi 0, %s107
      %s109 = sphi 0, %s107
      %s110 = sphi 0, %s109
      %s124 = sphi 0, %s110
      %s132 = sphi 0, %s134
      %s135 = sphi 0, %s132
      %s136 = sphi 0, %s135
      %s152 = sphi 0, %s136
    $region4: #{tpu_custom_call.1} parent=1 // loop_header_branch
      %20 = sbr.rel (%p18) target = $region8
    $region5: #{tpu_custom_call.1} parent=1 // loop_body
      %s22 = ssub.s32 %s17, 1
      %s23 = ssub.s32 %s17, 2
      %s30 = sadd.s32 1, %s25
      %p31 = scmp.ge.s32.totalorder %s30, 2
      %s32 = scalar_select %p31, 0, %s30
      %s33 = sadd.s32 1, %s24
      %s34 = scalar_select %p31, %s33, %s24
      %p35 = scmp.ge.s32.totalorder %s34, 2
      %s36 = scalar_select %p35, 0, %s34
      %s37 = ssub.s32 %s24, %s36
      %s38 = ssub.s32 %s25, %s32
      %s39 = sor.u32 %s37, %s38
      %p40 = scmp.eq.s32.totalorder %s39, 0
      %s42 = sadd.s32 %s41, 1
      %s43 = scalar_select %p40, %s41, %s42
      %p46 = pneg %p40
      %p47 = scmp.eq.s32.totalorder %s17, 3
      %p48 = por %p46, %p47
      %p49 = scmp.ne.s32.totalorder %s41, %s44
      %p50 = scmp.eq.s32.totalorder %s17, 0
      %p51 = por %p49, %p50
      %p52 = scmp.ne.s32.totalorder %s41, %s44
      %p53 = scmp.eq.s32.totalorder %s22, 3
      %p54 = por %p52, %p53
      %p55 = scmp.ne.s32.totalorder %s44, %s45
      %p56 = scmp.eq.s32.totalorder %s22, 0
      %p57 = por %p55, %p56
      %p58 = scmp.ne.s32.totalorder %s44, %s45
      %p59 = scmp.eq.s32.totalorder %s23, 3
      %p60 = por %p58, %p59
      %p62 = scmp.ne.s32.totalorder %s45, %s61
      %p63 = scmp.eq.s32.totalorder %s23, 0
      %p64 = por %p62, %p63
      %s66 = sadd.s32 %s65, 1
      %p69 = scmp.eq.s32.totalorder %s17, 3
      %p70 = scmp.ne.s32.totalorder %s65, %s67
      %p71 = scmp.eq.s32.totalorder %s17, 0
      %p72 = por %p70, %p71
      %p73 = scmp.ne.s32.totalorder %s65, %s67
      %p74 = scmp.eq.s32.totalorder %s22, 3
      %p75 = por %p73, %p74
      %p76 = scmp.ne.s32.totalorder %s67, %s68
      %p77 = scmp.eq.s32.totalorder %s22, 0
      %p78 = por %p76, %p77
      %p79 = scmp.ne.s32.totalorder %s67, %s68
      %p80 = scmp.eq.s32.totalorder %s23, 3
      %p81 = por %p79, %p80
      %p83 = scmp.ne.s32.totalorder %s68, %s82
      %p84 = scmp.eq.s32.totalorder %s23, 0
      %p85 = por %p83, %p84
      %s87 = sadd.s32 %s86, 1
      %p90 = scmp.eq.s32.totalorder %s17, 3
      %p91 = scmp.ne.s32.totalorder %s86, %s88
      %p92 = scmp.eq.s32.totalorder %s17, 0
      %p93 = por %p91, %p92
      %p94 = scmp.ne.s32.totalorder %s86, %s88
      %p95 = scmp.eq.s32.totalorder %s22, 3
      %p96 = por %p94, %p95
      %p97 = scmp.ne.s32.totalorder %s88, %s89
      %p98 = scmp.eq.s32.totalorder %s22, 0
      %p99 = por %p97, %p98
      %p100 = scmp.ne.s32.totalorder %s88, %s89
      %p101 = scmp.eq.s32.totalorder %s23, 3
      %p102 = por %p100, %p101
      %p104 = scmp.ne.s32.totalorder %s89, %s103
      %p105 = scmp.eq.s32.totalorder %s23, 0
      %p106 = por %p104, %p105
      %s108 = sadd.s32 %s107, 1
      %p111 = scmp.eq.s32.totalorder %s17, 3
      %p112 = scmp.ne.s32.totalorder %s107, %s109
      %p113 = scmp.eq.s32.totalorder %s17, 0
      %p114 = por %p112, %p113
      %p115 = scmp.ne.s32.totalorder %s107, %s109
      %p116 = scmp.eq.s32.totalorder %s22, 3
      %p117 = por %p115, %p116
      %p118 = scmp.ne.s32.totalorder %s109, %s110
      %p119 = scmp.eq.s32.totalorder %s22, 0
      %p120 = por %p118, %p119
      %p121 = scmp.ne.s32.totalorder %s109, %s110
      %p122 = scmp.eq.s32.totalorder %s23, 3
      %p123 = por %p121, %p122
      %p125 = scmp.ne.s32.totalorder %s110, %s124
      %p126 = scmp.eq.s32.totalorder %s23, 0
      %p127 = por %p125, %p126
      %s128 = ssub.s32 %s24, %s36
      %s129 = ssub.s32 %s25, %s32
      %s130 = sor.u32 %s128, %s129
      %p131 = scmp.eq.s32.totalorder %s130, 0
      %s133 = sadd.s32 %s132, 1
      %s134 = scalar_select %p131, %s132, %s133
      %p137 = pneg %p131
      %p138 = scmp.eq.s32.totalorder %s17, 3
      %p139 = por %p137, %p138
      %p140 = scmp.ne.s32.totalorder %s132, %s135
      %p141 = scmp.eq.s32.totalorder %s17, 0
      %p142 = por %p140, %p141
      %p143 = scmp.ne.s32.totalorder %s132, %s135
      %p144 = scmp.eq.s32.totalorder %s22, 3
      %p145 = por %p143, %p144
      %p146 = scmp.ne.s32.totalorder %s135, %s136
      %p147 = scmp.eq.s32.totalorder %s22, 0
      %p148 = por %p146, %p147
      %p149 = scmp.ne.s32.totalorder %s135, %s136
      %p150 = scmp.eq.s32.totalorder %s23, 3
      %p151 = por %p149, %p150
      %p153 = scmp.ne.s32.totalorder %s136, %s152
      %p154 = scmp.eq.s32.totalorder %s23, 0
      %p155 = por %p153, %p154
      %p156 = scmp.le.s32.totalorder 1, %s17
      %p157 = scmp.lt.s32.totalorder %s17, 5
      %p158 = pnand %p156, %p157
      %p159 = pneg %p158
      // Predicated region
      $region9: #{tpu_custom_call.1} parent=5 // pred_check
        _
      $region10: #{tpu_custom_call.1} parent=5 // pred_check_branch
        %161 = sbr.rel (%p158) target = $region12
      $region11: #{tpu_custom_call.1} parent=5 // pred_region
        %s162 = ssub.s32 %s17, 1
        // Predicated region
        $region13: #{tpu_custom_call.1} parent=11 // pred_check
          %p163 = pneg %p78
        $region14: #{tpu_custom_call.1} parent=11 // pred_check_branch
          %165 = sbr.rel (%p163) target = $region16
        $region15: #{tpu_custom_call.1} parent=11 // pred_region
          %s167 = ssub.s32 128, 128
          %168 = vsyncadd [#allocation6], %s167
          %s169 = sshll.u32 [#allocation5], 4
          %s170 = int_to_ptr.vmem [resolvable:$true] %s169
          %175 = dma.hbm_to_vmem [thread:$0]  %s1, 128, %s170, [#allocation6], 64, 64, 4
        $region16: #{tpu_custom_call.1} parent=11 // pred_fallthru
          _
        // Predicated region
        $region17: #{tpu_custom_call.1} parent=11 // pred_check
          %p176 = pneg %p99
        $region18: #{tpu_custom_call.1} parent=11 // pred_check_branch
          %178 = sbr.rel (%p176) target = $region20
        $region19: #{tpu_custom_call.1} parent=11 // pred_region
          %s180 = ssub.s32 128, 128
          %181 = vsyncadd [#allocation6], %s180
          %s183 = sshll.u32 [#allocation7], 4
          %s184 = int_to_ptr.vmem [resolvable:$true] %s183
          %186 = dma.hbm_to_vmem [thread:$0]  %s2, 128, %s184, [#allocation6]
        $region20: #{tpu_custom_call.1} parent=11 // pred_fallthru
          _
        // Predicated region
        $region21: #{tpu_custom_call.1} parent=11 // pred_check
          %p187 = pneg %p120
        $region22: #{tpu_custom_call.1} parent=11 // pred_check_branch
          %189 = sbr.rel (%p187) target = $region24
        $region23: #{tpu_custom_call.1} parent=11 // pred_region
          _
        $region24: #{tpu_custom_call.1} parent=11 // pred_fallthru
          _
      $region12: #{tpu_custom_call.1} parent=5 // pred_fallthru
        _
      %p190 = scmp.lt.s32.totalorder %s17, 4
      // Predicated region
      $region25: #{tpu_custom_call.1} parent=5 // pred_check
        %p191 = pneg %p190
      $region26: #{tpu_custom_call.1} parent=5 // pred_check_branch
        %193 = sbr.rel (%p191) target = $region28
      $region27: #{tpu_custom_call.1} parent=5 // pred_region
        // Predicated region
        $region29: #{tpu_custom_call.1} parent=27 // pred_check
          %p194 = pneg %p51
        $region30: #{tpu_custom_call.1} parent=27 // pred_check_branch
          %196 = sbr.rel (%p194) target = $region32
        $region31: #{tpu_custom_call.1} parent=27 // pred_region
          %s197 = sand.u32 %s41, 1
          %s198 = scalar_lea.sflag [#allocation3], %s197
          %s199 = sand.u32 %s41, 1
          %s200 = smul.addr %s199, 4
          %s201 = scalar_lea.vmem [#allocation2], %s200
          %s203 = ssub.s32 64, 64
          %204 = vsyncadd %s198, %s203
          %s205 = smul.addr %s24, 2
          %s206 = sadd.s32 %s25, %s205
          %s207 = smul.addr %s206, 64
          %s208 = scalar_lea.hbm %s0, %s207
          %s210 = sshll.u32 %s201, 4
          %s211 = int_to_ptr.vmem [resolvable:$true] %s210
          %213 = dma.hbm_to_vmem [thread:$0]  %s208, 64, %s211, %s198
        $region32: #{tpu_custom_call.1} parent=27 // pred_fallthru
          _
      $region28: #{tpu_custom_call.1} parent=5 // pred_fallthru
        _
      %p214 = scmp.le.s32.totalorder 1, %s17
      %p215 = scmp.lt.s32.totalorder %s17, 5
      %p216 = pnand %p214, %p215
      %p217 = pneg %p216
      // Predicated region
      $region33: #{tpu_custom_call.1} parent=5 // pred_check
        _
      $region34: #{tpu_custom_call.1} parent=5 // pred_check_branch
        %219 = sbr.rel (%p216) target = $region36
      $region35: #{tpu_custom_call.1} parent=5 // pred_region
        %s220 = ssub.s32 %s17, 1
        %s221 = sand.u32 %s44, 1
        %s222 = scalar_lea.sflag [#allocation3], %s221
        %s223 = sand.u32 %s44, 1
        %s224 = smul.addr %s223, 4
        %s225 = scalar_lea.vmem [#allocation2], %s224
        // Predicated region
        $region37: #{tpu_custom_call.1} parent=35 // pred_check
          %p226 = pneg %p57
        $region38: #{tpu_custom_call.1} parent=35 // pred_check_branch
          %228 = sbr.rel (%p226) target = $region40
        $region39: #{tpu_custom_call.1} parent=35 // pred_region
          %229 = dma.done %s222, 64
        $region40: #{tpu_custom_call.1} parent=35 // pred_fallthru
          _
        // Predicated region
        $region41: #{tpu_custom_call.1} parent=35 // pred_check
          %p230 = pneg %p78
        $region42: #{tpu_custom_call.1} parent=35 // pred_check_branch
          %232 = sbr.rel (%p230) target = $region44
        $region43: #{tpu_custom_call.1} parent=35 // pred_region
          %233 = dma.done [#allocation6], 128
        $region44: #{tpu_custom_call.1} parent=35 // pred_fallthru
          _
        // Predicated region
        $region45: #{tpu_custom_call.1} parent=35 // pred_check
          %p234 = pneg %p99
        $region46: #{tpu_custom_call.1} parent=35 // pred_check_branch
          %236 = sbr.rel (%p234) target = $region48
        $region47: #{tpu_custom_call.1} parent=35 // pred_region
          %237 = dma.done [#allocation6], 128
        $region48: #{tpu_custom_call.1} parent=35 // pred_fallthru
          _
        %s238 = sand.u32 %s44, 1
        %s239 = scalar_lea.sflag [#allocation3], %s238
        %s240 = sand.u32 %s44, 1
        %s241 = smul.addr %s240, 4
        %s242 = scalar_lea.vmem [#allocation2], %s241
        %p243 = pneg %p57
        %p244 = pneg %p54
        %p245 = pneg %p78
        %p246 = pneg %p75
        %p247 = pneg %p99
        %p248 = pneg %p96
        %p249 = pneg %p120
        %p250 = pneg %p117
        %p251 = pneg %p148
        %p252 = pneg %p145
        %s253 = sand.u32 %s135, 1
        %s254 = scalar_lea.sflag [#allocation4], %s253
        %s255 = sand.u32 %s135, 1
        %s256 = smul.addr %s255, 8
        %s257 = scalar_lea.vmem [#allocation8], %s256
        %v259 = vld [vmem:[%s225] sm:$0xf]
        %v260 = vld [vmem:[#allocation5] sm:$0xf]
        %v261 = vld [vmem:[#allocation5 + $0x4] sm:$0xf]
        %v262 = vld [vmem:[#allocation7] sm:$0xff]
        %v263 = vlaneseq
        %v264 = vshrl.u32 %v263, 7
        %v265 = vsub.s32 0, %v264
        %v266 = vrot.slane %v262, %v265
        %v269 = vunpack.c.l.b16 %v260
        %v270 = vunpack.c.l.b16 %v261
        %v271 = vpack.c.b16 %v270, %v269
        %vm273 = vcmask 130048
        %v275 = vsel %vm273, %v259, 0
        %277 = vmatprep.subr.bf16.mxu0 0
        %278 = vmatpush1.bf16.msra.mxu0 %v271
        %279 = vmatprep.subr.bf16.mxu0 0
        %280 = vmatpush1.bf16.msra.mxu0 0
        %281 = vmatprep.subr.bf16.mxu0 0
        %282 = vmatpush1.bf16.msra.mxu0 0
        %283 = vmatprep.subr.bf16.mxu0 0
        %284 = vmatpush1.bf16.msra.mxu0 0
        %285 = vmatprep.subr.bf16.mxu0 0
        %286 = vmatpush1.bf16.msra.mxu0 0
        %287 = vmatprep.subr.bf16.mxu0 0
        %288 = vmatpush1.bf16.msra.mxu0 0
        %289 = vmatprep.subr.bf16.mxu0 0
        %290 = vmatpush1.bf16.msra.mxu0 0
        %291 = vmatprep.subr.bf16.mxu0 0
        %292 = vmatpush1.bf16.msra.mxu0 0
        %293 = vmatprep.subr.bf16.mxu0 0
        %294 = vmatpush1.bf16.msra.mxu0 0
        %295 = vmatprep.subr.bf16.mxu0 0
        %296 = vmatpush1.bf16.msra.mxu0 0
        %297 = vmatprep.subr.bf16.mxu0 0
        %298 = vmatpush1.bf16.msra.mxu0 0
        %299 = vmatprep.subr.bf16.mxu0 0
        %300 = vmatpush1.bf16.msra.mxu0 0
        %301 = vmatprep.subr.bf16.mxu0 0
        %302 = vmatpush1.bf16.msra.mxu0 0
        %303 = vmatprep.subr.bf16.mxu0 0
        %304 = vmatpush1.bf16.msra.mxu0 0
        %305 = vmatprep.subr.bf16.mxu0 0
        %306 = vmatpush1.bf16.msra.mxu0 0
        %307 = vmatprep.subr.bf16.mxu0 0
        %308 = vmatpush1.bf16.msra.mxu0 0
        %309 = vmatprep.mubr.bf16.mxu0 0
        %310 = vmatmul.mubr.bf16.gmra.mrb[0].mxu0 %v275
        %v311 = vpop.f32.mrb[0].mxu0
        %v312 = vadd.f32 %v266, %v311
        %v313 = vpop.f32.mrb[0].mxu0
        %v314 = vpop.f32.mrb[0].mxu0
        %v315 = vpop.f32.mrb[0].mxu0
        %316 = vdwg.mxu0
        %317 = vadd.xlane.f32.xlu0 %v312
        %v318 = vpop.xlane.xlu0 %317
        %v319 = vmul.f32 %v318, 0.03125
        %v320 = vmul.f32 %v312, %v312
        %321 = vadd.xlane.f32.xlu0 %v320
        %v322 = vpop.xlane.xlu0 %321
        %v323 = vmul.f32 %v322, 0.03125
        %v324 = vmul.f32 %v319, %v319
        %v325 = vsub.f32 %v323, %v324
        %v326 = vsub.f32 %v312, %v319
        %v327 = vadd.f32 %v325, 1e-05
        %v328 = vrsqrt.pop %v327
        %v329 = vmul.f32 %v326, %v328
        %v330 = vlaneseq
        %v331 = vshrl.u32 %v330, 7
        %v332 = vsub.s32 1, %v331
        %v333 = vrot.slane %v262, %v332
        %v334 = vmul.f32 %v329, %v333
        %v335 = vlaneseq
        %v336 = vshrl.u32 %v335, 7
        %v337 = vsub.s32 2, %v336
        %v338 = vrot.slane %v262, %v337
        %v339 = vadd.f32 %v334, %v338
        %v340 = vmax.f32 %v339, 0.0
        %s341 = smul.u32 %s27, 8
        %s342 = sshra.s32 %s341, 3
        %s343 = sand.u32 %s341, 7
        %s344 = smul.addr %s342, 4
        %s345 = scalar_lea.vmem %s3, %s344
        %v346 = vld [vmem:[%s345] sm:$0xf]
        %v347 = vunpack.c.l.bf16 %v346
        %v348 = vadd.f32 %v340, %v347
        %349 = vst [vmem:[%s257] sm:$0xff] %v348
        %s350 = sand.u32 %s135, 1
        %s351 = scalar_lea.sflag [#allocation4], %s350
        %s352 = sand.u32 %s135, 1
        %s353 = smul.addr %s352, 8
        %s354 = scalar_lea.vmem [#allocation8], %s353
        // Predicated region
        $region49: #{tpu_custom_call.1} parent=35 // pred_check
          %p355 = pneg %p145
        $region50: #{tpu_custom_call.1} parent=35 // pred_check_branch
          %357 = sbr.rel (%p355) target = $region52
        $region51: #{tpu_custom_call.1} parent=35 // pred_region
          %s359 = ssub.s32 128, 128
          %360 = vsyncadd %s351, %s359
          %s361 = smul.addr %s26, 2
          %s362 = sadd.s32 %s27, %s361
          %s363 = smul.addr %s362, 128
          %s364 = scalar_lea.hbm %s4, %s363
          %s366 = sshll.u32 %s354, 4
          %s367 = int_to_ptr.vmem [resolvable:$true] %s366
          %369 = dma.vmem_to_hbm [thread:$0]  %s367, 128, %s364, %s351
        $region52: #{tpu_custom_call.1} parent=35 // pred_fallthru
          _
      $region36: #{tpu_custom_call.1} parent=5 // pred_fallthru
        _
      %p370 = scmp.le.s32.totalorder 2, %s17
      // Predicated region
      $region53: #{tpu_custom_call.1} parent=5 // pred_check
        %p371 = pneg %p370
      $region54: #{tpu_custom_call.1} parent=5 // pred_check_branch
        %373 = sbr.rel (%p371) target = $region56
      $region55: #{tpu_custom_call.1} parent=5 // pred_region
        %s374 = ssub.s32 %s17, 2
        // Predicated region
        $region57: #{tpu_custom_call.1} parent=55 // pred_check
          %p375 = pneg %p151
        $region58: #{tpu_custom_call.1} parent=55 // pred_check_branch
          %377 = sbr.rel (%p375) target = $region60
        $region59: #{tpu_custom_call.1} parent=55 // pred_region
          %s378 = sand.u32 %s136, 1
          %s379 = scalar_lea.sflag [#allocation4], %s378
          %s380 = sand.u32 %s136, 1
          %s381 = smul.addr %s380, 8
          %s382 = scalar_lea.vmem [#allocation8], %s381
          %383 = dma.done %s379, 128
        $region60: #{tpu_custom_call.1} parent=55 // pred_fallthru
          _
      $region56: #{tpu_custom_call.1} parent=5 // pred_fallthru
        _
    $region6: #{tpu_custom_call.1} parent=1 // loop_footer
      %s21 = sadd.s32 1, %s17
    $region7: #{tpu_custom_call.1} parent=1 // loop_footer_branch
      %16 = sbr.rel target = $region3
    $region8: #{tpu_custom_call.1} parent=1 // loop_exit
      _
    %384 = vsyncpa [#allocation3], 1
    %s385 = scalar_lea.sflag [#allocation3], 1
    %386 = vsyncpa %s385, 1
    %387 = vsyncpa [#allocation6], 1
    %388 = vsyncpa [#allocation4], 1
    %s389 = scalar_lea.sflag [#allocation4], 1
    %390 = vsyncpa %s389, 1

</llo_original>
